<compile_context>
chip_gen: v7x
topology: tpu7x:2x2x1
jax: 0.10.0
libtpu: 0.0.40
codegen_flags: <defaults>
</compile_context>

<pallas_src>
import jax
import jax.numpy as jnp
import numpy as np
from jax.experimental import pallas as pl
from jax.experimental.pallas import tpu as pltpu


def film_kernel(scale_p1_ref, shift_ref, h_ref, out_ref):
    """Per-tile body: out = h * (1 + scale) + shift.

    scale_p1_ref / shift_ref: [tR, 1]    (row-broadcast inside the VPU)
    h_ref / out_ref:          [tR, tHW]  (lane-dense spatial tile)
    """
    mod = h_ref[...] * scale_p1_ref[...] + shift_ref[...]
    out_ref[...] = mod.astype(out_ref.dtype)


def _round_down(x, m):
    return (x // m) * m


def _block_budget():
    """Generation-aware (target_block_bytes, vmem_limit_bytes)."""
    try:
        vmem = pltpu.get_tpu_info().vmem_capacity_bytes
    except Exception:
        vmem = None
    if vmem is not None and vmem > 64 * 1024 * 1024:
        # v5e / v6e: 128 MiB physical VMEM -> bigger tiles amortize per-step cost.
        return 8 * 1024 * 1024, 48 * 1024 * 1024
    # v7x (64 MiB per TC) or unknown chip: conservative, safe everywhere.
    return 4 * 1024 * 1024, 32 * 1024 * 1024


def film_forward(h, emb, w, b, features, *, donate_h=False):
    """h: [B, C, H, W] (NCHW), emb: [B, emb_ch, 1, 1], w: [2F, emb_ch], b: [2F]."""
    B, C, H, W = h.shape
    assert C == features
    E = emb.shape[1]
    assert emb.shape[2] == 1 and emb.shape[3] == 1  # time-embedding style conditioning

    # --- Tiny conditioning path (hoisted out of the per-tile kernel, f32) -------
    e = emb.reshape(B, E).astype(jnp.float32)
    e = e * jax.nn.sigmoid(e)                                   # SiLU
    ss = e @ w.astype(jnp.float32).T + b.astype(jnp.float32)    # [B, 2F]
    param_dtype = h.dtype if h.dtype == jnp.bfloat16 else jnp.float32
    scale_p1 = (1.0 + ss[:, :features]).reshape(B * features, 1).astype(param_dtype)
    shift = ss[:, features:].reshape(B * features, 1).astype(param_dtype)

    # --- Heavy path: broadcast FMA over the feature map, tiled ------------------
    rows = B * C
    HW = H * W
    h_flat = h.reshape(rows, HW)
    itemsize = jnp.dtype(h.dtype).itemsize
    param_itemsize = jnp.dtype(param_dtype).itemsize

    target_block_bytes, vmem_limit = _block_budget()

    # Sublane multiple is dtype-aware (8 f32, 16 bf16, 32 int8/fp8).
    sub = {4: 8, 2: 16, 1: 32}.get(itemsize, 8)

    # Spatial tile: lane-dense (multiple of 128) or the full extent when small.
    if HW <= 128:
        tHW = HW
    else:
        lane_cap = max(_round_down(target_block_bytes // (sub * itemsize), 128), 128)
        tHW = min(max(_round_down(HW, 128), 128), lane_cap)

    # Row tile: multiple of the sublane count (or the full extent when small),
    # sized so one h block is ~target_block_bytes.
    if rows <= sub:
        tR = rows
    else:
        row_cap = max(_round_down(target_block_bytes // (tHW * itemsize), sub), sub)
        tR = min(max(_round_down(rows, sub), sub), row_cap)

    grid = (pl.cdiv(rows, tR), pl.cdiv(HW, tHW))

    cost = pl.CostEstimate(
        flops=2 * rows * HW,                        # one mul + one add per element
        transcendentals=0,                          # SiLU lives in the wrapper
        bytes_accessed=2 * rows * HW * itemsize + 2 * rows * param_itemsize,
    )

    out_flat = pl.pallas_call(
        film_kernel,
        out_shape=jax.ShapeDtypeStruct((rows, HW), h.dtype),
        grid=grid,
        in_specs=[
            pl.BlockSpec((tR, 1), lambda ri, si: (ri, 0)),      # 1 + scale
            pl.BlockSpec((tR, 1), lambda ri, si: (ri, 0)),      # shift
            pl.BlockSpec((tR, tHW), lambda ri, si: (ri, si)),   # h tile
        ],
        out_specs=pl.BlockSpec((tR, tHW), lambda ri, si: (ri, si)),
        compiler_params=pltpu.CompilerParams(
            dimension_semantics=("parallel", "parallel"),
            vmem_limit_bytes=vmem_limit,
        ),
        cost_estimate=cost,
        input_output_aliases={2: 0} if donate_h else {},
    )(scale_p1, shift, h_flat)

    return out_flat.reshape(B, C, H, W)


def film_ref(h, emb, w, b, features):
    # Pure-JAX reference mirroring the PyTorch forward exactly.
    B, E = emb.shape[0], emb.shape[1]
    e = emb.reshape(B, E)
    e = e * jax.nn.sigmoid(e)
    ss = e @ w.T + b                                  # [B, 2F]
    scale = ss[:, :features][:, :, None, None]        # [B, F, 1, 1]
    shift = ss[:, features:][:, :, None, None]
    return h * (1.0 + scale) + shift


if __name__ == "__main__":
    features = 4
    emb_ch = 32
    B = 2

    key = jax.random.PRNGKey(0)
    k_h, k_e, k_w, k_b, k_h2 = jax.random.split(key, 5)

    # Deterministic Linear(emb_ch, 2*features) params (PyTorch-style uniform init).
    bound = 1.0 / np.sqrt(emb_ch)
    w = jax.random.uniform(k_w, (2 * features, emb_ch), jnp.float32, -bound, bound)
    b = jax.random.uniform(k_b, (2 * features,), jnp.float32, -bound, bound)
    emb = jax.random.normal(k_e, (B, emb_ch, 1, 1), dtype=jnp.float32)

    # Case 1: 128-aligned spatial extent (16x16).
    h1 = jax.random.normal(k_h, (B, features, 16, 16), dtype=jnp.float32)
    out1 = jax.block_until_ready(film_forward(h1, emb, w, b, features))
    np.testing.assert_allclose(
        np.asarray(out1), np.asarray(film_ref(h1, emb, w, b, features)),
        rtol=1e-5, atol=1e-5)

    # Case 2: ragged spatial extent (13x13 -> HW=169), exercises cdiv edge tiles.
    h2 = jax.random.normal(k_h2, (B, features, 13, 13), dtype=jnp.float32)
    out2 = jax.block_until_ready(film_forward(h2, emb, w, b, features))
    np.testing.assert_allclose(
        np.asarray(out2), np.asarray(film_ref(h2, emb, w, b, features)),
        rtol=1e-5, atol=1e-5)

    print("KERNEL_OK")
</pallas_src>

<mosaic_0001>
module attributes {stable_mosaic.version = 11 : i64} {
  func.func @film_kernel(%arg0: i32, %arg1: i32, %arg2: memref<8x1xf32, #tpu.memory_space<vmem>>, %arg3: memref<8x1xf32, #tpu.memory_space<vmem>>, %arg4: memref<8x256xf32, #tpu.memory_space<vmem>>, %arg5: memref<8x256xf32, #tpu.memory_space<vmem>>) attributes {dimension_semantics = [#tpu.dimension_semantics<parallel>, #tpu.dimension_semantics<parallel>], iteration_bounds = array<i64: 1, 1>, scalar_prefetch = 0 : i64, scratch_operands = 0 : i64, tpu.core_type = #tpu.core_type<tc>, window_params = [{transform_indices = @transform_0, window_bounds = array<i64: 8, 1>}, {transform_indices = @transform_1, window_bounds = array<i64: 8, 1>}, {transform_indices = @transform_2, window_bounds = array<i64: 8, 256>}, {transform_indices = @transform_3, window_bounds = array<i64: 8, 256>}]} {
    %c0 = arith.constant 0 : index
    %c0_0 = arith.constant 0 : index
    %0 = vector.load %arg4[%c0, %c0_0] : memref<8x256xf32, #tpu.memory_space<vmem>>, vector<8x256xf32>
    %c0_1 = arith.constant 0 : index
    %c0_2 = arith.constant 0 : index
    %1 = vector.load %arg2[%c0_1, %c0_2] : memref<8x1xf32, #tpu.memory_space<vmem>>, vector<8x1xf32>
    %2 = vector.broadcast %1 : vector<8x1xf32> to vector<8x256xf32>
    %3 = arith.mulf %0, %2 : vector<8x256xf32>
    %c0_3 = arith.constant 0 : index
    %c0_4 = arith.constant 0 : index
    %4 = vector.load %arg3[%c0_3, %c0_4] : memref<8x1xf32, #tpu.memory_space<vmem>>, vector<8x1xf32>
    %5 = vector.broadcast %4 : vector<8x1xf32> to vector<8x256xf32>
    %6 = arith.addf %3, %5 : vector<8x256xf32>
    %c0_5 = arith.constant 0 : index
    %c0_6 = arith.constant 0 : index
    %7 = vector.load %arg5[%c0_5, %c0_6] : memref<8x256xf32, #tpu.memory_space<vmem>>, vector<8x256xf32>
    tpu.vector_store %arg5[%c0_5, %c0_6], %6 {strides = array<i32>} : memref<8x256xf32, #tpu.memory_space<vmem>>, vector<8x256xf32>,
    return
  }
  func.func @transform_0(%arg0: i32, %arg1: i32) -> (i32, i32) {
    %c0_i32 = arith.constant 0 : i32
    %c0_i32_0 = arith.constant 0 : i32
    return %arg0, %c0_i32 : i32, i32
  }
  func.func @transform_1(%arg0: i32, %arg1: i32) -> (i32, i32) {
    %c0_i32 = arith.constant 0 : i32
    %c0_i32_0 = arith.constant 0 : i32
    return %arg0, %c0_i32 : i32, i32
  }
  func.func @transform_2(%arg0: i32, %arg1: i32) -> (i32, i32) {
    %c0_i32 = arith.constant 0 : i32
    return %arg0, %arg1 : i32, i32
  }
  func.func @transform_3(%arg0: i32, %arg1: i32) -> (i32, i32) {
    %c0_i32 = arith.constant 0 : i32
    return %arg0, %arg1 : i32, i32
  }
}

</mosaic_0001>

<llo_original>
// kernel: tpu_custom_call.1
$region0: #{tpu_custom_call.1}
  #allocation0 [shape = 'u32[]', space=smem, size = 0x4, offset = 0x4, fixed_abs, tag = 'smem constant byte address 0x4 - core index']
  #allocation1 [shape = 'u32[144,128]{1,0:T(1,128)}', space=vmem, size = 0x12000, scoped, tag = 'internal scratch']
  %s0 = inlined_call_operand.vmem [shape: f32[8,1], index: 0, kind: input, shape index: {}]
  %s1 = inlined_call_operand.vmem [shape: f32[8,1], index: 1, kind: input, shape index: {}]
  %s2 = inlined_call_operand.vmem [shape: f32[8,256], index: 2, kind: input, shape index: {}]
  %s3 = inlined_call_operand.hbm [shape: f32[8,256], index: 3, kind: output, shape index: {}]
  %s4 = sld [smem:[#allocation0]]
  $region22: #{tpu_custom_call.1} parent=0
    _
  %s6 = ssub.s32 1, %s4
  %s7 = scalar_select 0, %s6, %s4
  $region1: #{tpu_custom_call.1} parent=0
    #allocation2 [shape = 'u8[8192]{0}', space=vmem, size = 0x2000, scoped, tag = 'output window, operand 0, single buffered']
    #allocation3 [shape = 's32[1]{0}', space=sflag, size = 0x4, scoped, tag = 'scoped memory for tpu_custom_call.1']
    %8 = vsyncpa [#allocation3], 0
    // Predicated region
    $region2: #{tpu_custom_call.1} parent=1 // pred_check
      _
    $region3: #{tpu_custom_call.1} parent=1 // pred_check_branch
      %10 = sbr.rel (0) target = $region5
    $region4: #{tpu_custom_call.1} parent=1 // pred_region
      _
    $region5: #{tpu_custom_call.1} parent=1 // pred_fallthru
      _
    // Predicated region
    $region6: #{tpu_custom_call.1} parent=1 // pred_check
      _
    $region7: #{tpu_custom_call.1} parent=1 // pred_check_branch
      %12 = sbr.rel (0) target = $region9
    $region8: #{tpu_custom_call.1} parent=1 // pred_region
      _
    $region9: #{tpu_custom_call.1} parent=1 // pred_fallthru
      _
    // Predicated region
    $region10: #{tpu_custom_call.1} parent=1 // pred_check
      _
    $region11: #{tpu_custom_call.1} parent=1 // pred_check_branch
      %14 = sbr.rel (0) target = $region13
    $region12: #{tpu_custom_call.1} parent=1 // pred_region
      _
    $region13: #{tpu_custom_call.1} parent=1 // pred_fallthru
      _
    %v15 = vld [vmem:[%s2] sm:$0xff]
    %v16 = vld [vmem:[%s2 + $0x8] sm:$0xff]
    %v17 = vld [vmem:[%s0] sm:$0xff]
    %19 = vset.pattern.permute.xlu0 0
    %20 = vperm.xlu0 %19, %v17
    %v21 = vpop.permute.xlu0 %20
    %v23 = vmul.f32 %v15, %v21
    %v24 = vmul.f32 %v16, %v21
    %v25 = vld [vmem:[%s1] sm:$0xff]
    %27 = vset.pattern.permute.xlu0 0
    %28 = vperm.xlu0 %27, %v25
    %v29 = vpop.permute.xlu0 %28
    %v31 = vadd.f32 %v23, %v29
    %v32 = vadd.f32 %v24, %v29
    %33 = vst [vmem:[#allocation2] sm:$0xff] %v31
    %34 = vst [vmem:[#allocation2 + $0x8] sm:$0xff] %v32
    // Predicated region
    $region14: #{tpu_custom_call.1} parent=1 // pred_check
      _
    $region15: #{tpu_custom_call.1} parent=1 // pred_check_branch
      %36 = sbr.rel (0) target = $region17
    $region16: #{tpu_custom_call.1} parent=1 // pred_region
      %s38 = ssub.s32 256, 256
      %39 = vsyncadd [#allocation3], %s38
      %s41 = sshll.u32 [#allocation2], 4
      %s42 = int_to_ptr.vmem [resolvable:$true] %s41
      %44 = dma.vmem_to_hbm [thread:$0]  %s42, 256, %s3, [#allocation3]
    $region17: #{tpu_custom_call.1} parent=1 // pred_fallthru
      _
    // Predicated region
    $region18: #{tpu_custom_call.1} parent=1 // pred_check
      _
    $region19: #{tpu_custom_call.1} parent=1 // pred_check_branch
      %46 = sbr.rel (0) target = $region21
    $region20: #{tpu_custom_call.1} parent=1 // pred_region
      %47 = dma.done [#allocation3], 256
    $region21: #{tpu_custom_call.1} parent=1 // pred_fallthru
      _
    %48 = vsyncpa [#allocation3], 1

</llo_original>
